<compile_context>
chip_gen: v6e
topology: v6e:2x2x1
jax: 0.10.0
libtpu: 0.0.40
codegen_flags: <defaults>
</compile_context>

<pallas_src>
import jax
import jax.numpy as jnp
from jax.experimental import pallas as pl
from jax.experimental.pallas import tpu as pltpu


_SUBLANE = 8
_LANE = 128
# Lanes per grid step: 8 sublanes * 16384 lanes * 4 B = 512 KiB per block (f32),
# double-buffered -> ~1 MiB VMEM per operand. Comfortably inside every chip's VMEM.
_BLOCK_COLS = 16384


# ---------------------------------------------------------------------------
# Pallas kernel
# ---------------------------------------------------------------------------

def _stanhv2_kernel(x_ref, o_ref):
    """Elementwise clamp(0.5 * x, -1, 1) on one (8, block_cols) tile."""
    x = x_ref[...]
    one = jnp.asarray(1, x.dtype)
    half = x * jnp.asarray(0.5, x.dtype)
    o_ref[...] = jnp.minimum(one, jnp.maximum(half, -one))


# ---------------------------------------------------------------------------
# Wrapper
# ---------------------------------------------------------------------------

def stanhv2(x):
    """Pallas implementation of STanhv2.forward for arbitrary-shaped input."""
    orig_shape = x.shape
    dtype = x.dtype
    n = x.size

    # Flatten to a lane-dense (8, cols) slab, cols a multiple of 128.
    min_chunk = _SUBLANE * _LANE                      # 1024 elements
    if n <= _SUBLANE * _BLOCK_COLS:
        cols = pl.cdiv(n, min_chunk) * _LANE          # single grid step
        block_cols = cols
    else:
        block_cols = _BLOCK_COLS
        per_block = _SUBLANE * block_cols
        cols = pl.cdiv(n, per_block) * block_cols

    padded = _SUBLANE * cols
    xf = jnp.ravel(x)                                 # contiguous reshape: free
    if padded != n:
        xf = jnp.pad(xf, (0, padded - n))
    x2 = xf.reshape(_SUBLANE, cols)

    out = pl.pallas_call(
        _stanhv2_kernel,
        out_shape=jax.ShapeDtypeStruct((_SUBLANE, cols), dtype),
        grid=(cols // block_cols,),
        in_specs=[pl.BlockSpec((_SUBLANE, block_cols), lambda i: (0, i))],
        out_specs=pl.BlockSpec((_SUBLANE, block_cols), lambda i: (0, i)),
        compiler_params=pltpu.CompilerParams(
            dimension_semantics=("parallel",)),
    )(x2)

    out = out.reshape(-1)
    if padded != n:
        out = out[:n]
    return out.reshape(orig_shape)


# ---------------------------------------------------------------------------
# Pure-JAX reference
# ---------------------------------------------------------------------------

def ref_stanhv2(x):
    return jnp.minimum(jnp.ones_like(x), jnp.maximum(x * 0.5, -jnp.ones_like(x)))


# ---------------------------------------------------------------------------

if __name__ == "__main__":
    key = jax.random.PRNGKey(0)
    k1, k2 = jax.random.split(key)

    fwd = jax.jit(stanhv2)

    # Main test: small 4-D tensor like the PyTorch module would receive.
    # Scale by 4 so both clamp branches (x*0.5 > 1 and < -1) are exercised.
    x = 4.0 * jax.random.normal(k1, (2, 4, 16, 16), jnp.float32)
    out = jax.block_until_ready(fwd(x))
    ref = jax.block_until_ready(ref_stanhv2(x))
    assert out.shape == x.shape
    assert out.dtype == x.dtype
    assert jnp.allclose(out, ref, atol=0.0, rtol=0.0), "mismatch vs reference"

    # Secondary test: ragged size that exercises the padding path.
    y = 4.0 * jax.random.normal(k2, (3, 50), jnp.float32)
    out_y = jax.block_until_ready(jax.jit(stanhv2)(y))
    ref_y = jax.block_until_ready(ref_stanhv2(y))
    assert out_y.shape == y.shape
    assert jnp.allclose(out_y, ref_y, atol=0.0, rtol=0.0), "mismatch vs reference (ragged)"

    print("KERNEL_OK")
</pallas_src>

<mosaic_0001>
module attributes {stable_mosaic.version = 11 : i64} {
  func.func @_stanhv2_kernel(%arg0: i32, %arg1: memref<8x256xf32, #tpu.memory_space<vmem>>, %arg2: memref<8x256xf32, #tpu.memory_space<vmem>>) attributes {dimension_semantics = [#tpu.dimension_semantics<parallel>], iteration_bounds = array<i64: 1>, scalar_prefetch = 0 : i64, scratch_operands = 0 : i64, tpu.core_type = #tpu.core_type<tc>, window_params = [{transform_indices = @transform_0, window_bounds = array<i64: 8, 256>}, {transform_indices = @transform_1, window_bounds = array<i64: 8, 256>}]} {
    %c0 = arith.constant 0 : index
    %c0_0 = arith.constant 0 : index
    %0 = vector.load %arg1[%c0, %c0_0] : memref<8x256xf32, #tpu.memory_space<vmem>>, vector<8x256xf32>
    %cst = arith.constant 5.000000e-01 : f32
    %1 = vector.broadcast %cst : f32 to vector<8x256xf32>
    %2 = arith.mulf %0, %1 : vector<8x256xf32>
    %cst_1 = arith.constant 0.000000e+00 : f32
    %cst_2 = arith.constant 1.000000e+00 : f32
    %3 = arith.subf %cst_1, %cst_2 : f32
    %4 = vector.broadcast %3 : f32 to vector<8x256xf32>
    %5 = arith.maximumf %2, %4 : vector<8x256xf32>
    %cst_3 = arith.constant 1.000000e+00 : f32
    %6 = vector.broadcast %cst_3 : f32 to vector<8x256xf32>
    %7 = arith.minimumf %6, %5 : vector<8x256xf32>
    %c0_4 = arith.constant 0 : index
    %c0_5 = arith.constant 0 : index
    %8 = vector.load %arg2[%c0_4, %c0_5] : memref<8x256xf32, #tpu.memory_space<vmem>>, vector<8x256xf32>
    tpu.vector_store %arg2[%c0_4, %c0_5], %7 {strides = array<i32>} : memref<8x256xf32, #tpu.memory_space<vmem>>, vector<8x256xf32>,
    return
  }
  func.func @transform_0(%arg0: i32) -> (i32, i32) {
    %c0_i32 = arith.constant 0 : i32
    %c0_i32_0 = arith.constant 0 : i32
    return %c0_i32, %arg0 : i32, i32
  }
  func.func @transform_1(%arg0: i32) -> (i32, i32) {
    %c0_i32 = arith.constant 0 : i32
    %c0_i32_0 = arith.constant 0 : i32
    return %c0_i32, %arg0 : i32, i32
  }
}

</mosaic_0001>

<llo_original>
// kernel: stanhv2.1
$region0: #{stanhv2.1}
  #allocation0 [shape = 'u32[]', space=smem, size = 0x4, offset = 0x4, fixed_abs, tag = 'smem constant byte address 0x4 - core index']
  #allocation1 [shape = 'u32[144,128]{1,0:T(1,128)}', space=vmem, size = 0x12000, scoped, tag = 'internal scratch']
  %s0 = inlined_call_operand.vmem [shape: f32[8,256], index: 0, kind: input, shape index: {}]
  %s1 = inlined_call_operand.vmem [shape: f32[8,256], index: 1, kind: output, shape index: {}]
  %s2 = sld [smem:[#allocation0]]
  $region14: #{stanhv2.1} parent=0
    _
  %s4 = ssub.s32 1, %s2
  %s5 = scalar_select 0, %s4, %s2
  // Predicated region
  $region2: #{stanhv2.1} parent=0 // pred_check
    _
  $region3: #{stanhv2.1} parent=0 // pred_check_branch
    %7 = sbr.rel (0) target = $region5
  $region4: #{stanhv2.1} parent=0 // pred_region
    _
  $region5: #{stanhv2.1} parent=0 // pred_fallthru
    _
  %v8 = vld [vmem:[%s0] sm:$0xff]
  %v9 = vld [vmem:[%s0 + $0x8] sm:$0xff]
  %v10 = vmul.f32 %v8, 0.5
  %v11 = vmul.f32 %v9, 0.5
  %v12 = vmax.f32 %v10, -1.0
  %v13 = vmax.f32 %v11, -1.0
  %v14 = vmin.f32 %v12, 1.0
  %v15 = vmin.f32 %v13, 1.0
  %16 = vst [vmem:[%s1] sm:$0xff] %v14
  %17 = vst [vmem:[%s1 + $0x8] sm:$0xff] %v15
  // Predicated region
  $region6: #{stanhv2.1} parent=0 // pred_check
    _
  $region7: #{stanhv2.1} parent=0 // pred_check_branch
    %19 = sbr.rel (0) target = $region9
  $region8: #{stanhv2.1} parent=0 // pred_region
    _
  $region9: #{stanhv2.1} parent=0 // pred_fallthru
    _
  // Predicated region
  $region10: #{stanhv2.1} parent=0 // pred_check
    _
  $region11: #{stanhv2.1} parent=0 // pred_check_branch
    %21 = sbr.rel (0) target = $region13
  $region12: #{stanhv2.1} parent=0 // pred_region
    _
  $region13: #{stanhv2.1} parent=0 // pred_fallthru
    _

</llo_original>
